<compile_context>
chip_gen: v7x
topology: tpu7x:2x2x1
jax: 0.10.0
libtpu: 0.0.40
codegen_flags: <defaults>
</compile_context>

<pallas_src>
import functools

import jax
import jax.numpy as jnp
import numpy as np
from jax.experimental import pallas as pl
from jax.experimental.pallas import tpu as pltpu

NEG_SLOPE = 0.2        # GATConv default LeakyReLU negative_slope
_MASK_VAL = -1e30      # additive mask value / running-max init
_MAX_TILE = 256        # default dst/src tile (multiple of 32 / 128)


def _round_up(v, m):
    return (v + m - 1) // m * m


def _pad_and_tile(n, max_tile):
    """Padded node count and tile size (same tile for dst rows and src cols)."""
    if n <= max_tile:
        n_pad = _round_up(n, 32)
        return n_pad, n_pad          # single full-array block
    n_pad = _round_up(n, max_tile)
    return n_pad, max_tile


def _blockdiag(a):
    """(heads, f) attention vectors -> (heads*f, heads) block-diagonal matrix."""
    heads, f = a.shape
    eye = jnp.eye(heads, dtype=a.dtype)
    return (a[:, :, None] * eye[:, None, :]).reshape(heads * f, heads)


# ----------------------------------------------------------------------------
# Kernel 1: linear transform  h = x @ W   (row-tiled, parallel)
# ----------------------------------------------------------------------------
def gat_linear_kernel(x_ref, w_ref, h_ref):
    x = x_ref[...].astype(jnp.float32)          # bf16 storage -> f32 compute
    h = jnp.dot(x, w_ref[...], preferred_element_type=jnp.float32)
    h_ref[...] = h.astype(h_ref.dtype)          # lane-dense (tile, hf) store


# ----------------------------------------------------------------------------
# Kernel 2: masked online-softmax + aggregation, flash-style over src tiles
# ----------------------------------------------------------------------------
def gat_attn_kernel(hdst_ref, hsrc_ref, adj_ref, asrc_t_ref, adst_ref, bias_ref,
                    out_ref, m_sc, l_sc, acc_sc, *, heads, f_out, apply_relu):
    j = pl.program_id(1)

    @pl.when(j == 0)
    def _init():
        m_sc[...] = jnp.full(m_sc.shape, _MASK_VAL, jnp.float32)
        l_sc[...] = jnp.zeros(l_sc.shape, jnp.float32)
        acc_sc[...] = jnp.zeros(acc_sc.shape, jnp.float32)

    # Additive mask, computed ONCE per (dst, src) block and hoisted out of the
    # head loop.  Rows that are fully masked in a block keep m at _MASK_VAL;
    # their bogus contributions are wiped by the exp(m_old - m_new) rescale as
    # soon as a real (self-loop) entry appears in a later block.
    mask_add = jnp.where(adj_ref[...] != 0, jnp.float32(0.0),
                         jnp.float32(_MASK_VAL))                       # (T, S)

    h_dst = hdst_ref[...].astype(jnp.float32)                          # (T, hf)
    h_src = hsrc_ref[...].astype(jnp.float32)                          # (S, hf)

    # Per-head attention scores for ALL heads via two tiny f32 matmuls against
    # block-diagonal attention vectors (no cross-lane reductions / transposes).
    s_dst = jnp.dot(h_dst, adst_ref[...],
                    preferred_element_type=jnp.float32)                # (T, H)
    s_src_t = jax.lax.dot_general(                                     # (H, S)
        asrc_t_ref[...], h_src,
        dimension_numbers=(((1,), (1,)), ((), ())),
        preferred_element_type=jnp.float32)

    for head in range(heads):                       # heads is small & static
        hs = head * f_out
        # e[i, s] = LeakyReLU(a_dst . h_i + a_src . h_s) + mask
        e = s_dst[:, head:head + 1] + s_src_t[head:head + 1, :]        # (T, S)
        e = jnp.maximum(e, jnp.float32(NEG_SLOPE) * e) + mask_add
        m_old = m_sc[:, head:head + 1]
        m_new = jnp.maximum(m_old, jnp.max(e, axis=-1, keepdims=True))
        alpha = jnp.exp(m_old - m_new)
        p = jnp.exp(e - m_new)                      # masked entries underflow
        l_sc[:, head:head + 1] = (alpha * l_sc[:, head:head + 1]
                                  + jnp.sum(p, axis=-1, keepdims=True))
        acc_sc[:, hs:hs + f_out] = (
            alpha * acc_sc[:, hs:hs + f_out]
            + jnp.dot(p, h_src[:, hs:hs + f_out],
                      preferred_element_type=jnp.float32))
        m_sc[:, head:head + 1] = m_new

    @pl.when(j == pl.num_programs(1) - 1)
    def _finalize():
        inv = pl.reciprocal(l_sc[...], approx=True)                    # (T, H)
        for head in range(heads):
            hs = head * f_out
            acc_sc[:, hs:hs + f_out] = (acc_sc[:, hs:hs + f_out]
                                        * inv[:, head:head + 1])
        out = acc_sc[...] + bias_ref[...]
        if apply_relu:
            out = jnp.maximum(out, jnp.float32(0.0))
        out_ref[...] = out.astype(out_ref.dtype)    # single lane-dense store


# ----------------------------------------------------------------------------
# One GAT layer (multi-head, concat=True, + bias)
# ----------------------------------------------------------------------------
def gat_conv(x, adj, w, a_src, a_dst, bias, *, heads, apply_relu, tile, out_dtype):
    n_pad, c_in = x.shape
    hf = w.shape[1]
    assert hf % heads == 0
    f_out = hf // heads
    nt = n_pad // tile                       # same tiling for dst rows / src cols

    adst_bd = _blockdiag(a_dst)              # (hf, heads)  f32
    asrc_bd_t = _blockdiag(a_src).T          # (heads, hf)  f32

    # Kernel 1: h = x @ W, stored bf16 (halves HBM for the attention stage).
    h = pl.pallas_call(
        gat_linear_kernel,
        grid=(nt,),
        in_specs=[
            pl.BlockSpec((tile, c_in), lambda i: (i, 0)),
            pl.BlockSpec((c_in, hf), lambda i: (0, 0)),
        ],
        out_specs=pl.BlockSpec((tile, hf), lambda i: (i, 0)),
        out_shape=jax.ShapeDtypeStruct((n_pad, hf), jnp.bfloat16),
        compiler_params=pltpu.CompilerParams(dimension_semantics=("parallel",)),
    )(x.astype(jnp.bfloat16), w)

    # Kernel 2: flash-style masked softmax + aggregation over source tiles.
    kernel = functools.partial(gat_attn_kernel, heads=heads, f_out=f_out,
                               apply_relu=apply_relu)
    out = pl.pallas_call(
        kernel,
        grid=(nt, nt),
        in_specs=[
            pl.BlockSpec((tile, hf), lambda i, j: (i, 0)),     # h, dst rows
            pl.BlockSpec((tile, hf), lambda i, j: (j, 0)),     # h, src rows
            pl.BlockSpec((tile, tile), lambda i, j: (i, j)),   # adj block (int8)
            pl.BlockSpec((heads, hf), lambda i, j: (0, 0)),    # a_src (blockdiag^T)
            pl.BlockSpec((hf, heads), lambda i, j: (0, 0)),    # a_dst (blockdiag)
            pl.BlockSpec((1, hf), lambda i, j: (0, 0)),        # bias
        ],
        out_specs=pl.BlockSpec((tile, hf), lambda i, j: (i, 0)),
        out_shape=jax.ShapeDtypeStruct((n_pad, hf), out_dtype),
        scratch_shapes=[
            pltpu.VMEM((tile, heads), jnp.float32),            # running max m
            pltpu.VMEM((tile, heads), jnp.float32),            # running denom l
            pltpu.VMEM((tile, hf), jnp.float32),               # running numerator
        ],
        compiler_params=pltpu.CompilerParams(
            dimension_semantics=("parallel", "arbitrary")),
    )(h, h, adj, asrc_bd_t, adst_bd, bias)
    return out


# ----------------------------------------------------------------------------
# AttentionalGCN forward:  relu(gat1(x, ei))  ->  gat2(., ei)
# ----------------------------------------------------------------------------
def build_dense_adj_int8(edge_index, n_pad):
    src, dst = edge_index[0], edge_index[1]
    adj = jnp.zeros((n_pad, n_pad), jnp.int8).at[dst, src].set(1)
    # Self loops (GATConv default); padded rows also get one so the masked
    # softmax stays well-defined (their outputs are sliced off anyway).
    return jnp.maximum(adj, jnp.eye(n_pad, dtype=jnp.int8))


def attentional_gcn(x, edge_index, params, *, heads, max_tile=_MAX_TILE):
    n = x.shape[0]
    n_pad, tile = _pad_and_tile(n, max_tile)
    x_p = jnp.pad(x, ((0, n_pad - n), (0, 0)))
    adj = build_dense_adj_int8(edge_index, n_pad)
    h = gat_conv(x_p, adj, params["w1"], params["a_src1"], params["a_dst1"],
                 params["b1"], heads=heads, apply_relu=True, tile=tile,
                 out_dtype=jnp.bfloat16)          # bf16 inter-layer activations
    out = gat_conv(h, adj, params["w2"], params["a_src2"], params["a_dst2"],
                   params["b2"], heads=1, apply_relu=False, tile=tile,
                   out_dtype=jnp.float32)
    return out[:n]


# ----------------------------------------------------------------------------
# Pure-JAX f32 reference (for correctness check)
# ----------------------------------------------------------------------------
def build_dense_adj_f32(edge_index, n):
    src, dst = edge_index[0], edge_index[1]
    adj = jnp.zeros((n, n), jnp.float32).at[dst, src].set(1.0)
    return jnp.maximum(adj, jnp.eye(n, dtype=jnp.float32))


def gat_layer_ref(x, adj, w, a_src, a_dst, bias, heads, apply_relu):
    n = x.shape[0]
    f = w.shape[1] // heads
    h = (x @ w).reshape(n, heads, f)
    s_src = jnp.einsum("nhf,hf->nh", h, a_src)
    s_dst = jnp.einsum("nhf,hf->nh", h, a_dst)
    e = s_dst[:, None, :] + s_src[None, :, :]            # (N_dst, N_src, H)
    e = jnp.where(e > 0, e, NEG_SLOPE * e)
    mask = adj[:, :, None] > 0
    e = jnp.where(mask, e, -1e30)
    e = e - jnp.max(e, axis=1, keepdims=True)
    p = jnp.where(mask, jnp.exp(e), 0.0)
    attn = p / jnp.sum(p, axis=1, keepdims=True)
    out = jnp.einsum("ijh,jhf->ihf", attn, h).reshape(n, heads * f)
    out = out + bias.reshape(-1)
    return jnp.maximum(out, 0.0) if apply_relu else out


def attentional_gcn_ref(x, edge_index, params, *, heads):
    adj = build_dense_adj_f32(edge_index, x.shape[0])
    h = gat_layer_ref(x, adj, params["w1"], params["a_src1"], params["a_dst1"],
                      params["b1"], heads, True)
    return gat_layer_ref(h, adj, params["w2"], params["a_src2"],
                         params["a_dst2"], params["b2"], 1, False)


# ----------------------------------------------------------------------------
if __name__ == "__main__":
    N, IN_C, HID_C, OUT_C, HEADS = 160, 16, 32, 8, 4
    # Small tile so the test exercises the multi-block (online-softmax) path:
    # n_pad = 256, tile = 128  ->  attention grid (2, 2).
    MAX_TILE = 128

    key = jax.random.PRNGKey(0)
    ks = jax.random.split(key, 10)

    params = {
        "w1":     0.2 * jax.random.normal(ks[0], (IN_C, HEADS * HID_C), jnp.float32),
        "a_src1": 0.2 * jax.random.normal(ks[1], (HEADS, HID_C), jnp.float32),
        "a_dst1": 0.2 * jax.random.normal(ks[2], (HEADS, HID_C), jnp.float32),
        "b1":     0.1 * jax.random.normal(ks[3], (1, HEADS * HID_C), jnp.float32),
        "w2":     0.2 * jax.random.normal(ks[4], (HEADS * HID_C, OUT_C), jnp.float32),
        "a_src2": 0.2 * jax.random.normal(ks[5], (1, OUT_C), jnp.float32),
        "a_dst2": 0.2 * jax.random.normal(ks[6], (1, OUT_C), jnp.float32),
        "b2":     0.1 * jax.random.normal(ks[7], (1, OUT_C), jnp.float32),
    }

    x = jax.random.normal(ks[8], (N, IN_C), jnp.float32)

    # Deterministic directed graph: ring + a few chords (no duplicate edges).
    idx = np.arange(N)
    src = np.concatenate([idx, idx[::4]])
    dst = np.concatenate([(idx + 1) % N, (idx[::4] * 7 + 3) % N])
    edge_index = jnp.array(np.stack([src, dst]), dtype=jnp.int32)

    out = attentional_gcn(x, edge_index, params, heads=HEADS, max_tile=MAX_TILE)
    out = jax.block_until_ready(out)

    ref = attentional_gcn_ref(x, edge_index, params, heads=HEADS)
    # bf16 storage of h / layer-1 activations (f32 compute) -> loose tolerance.
    np.testing.assert_allclose(np.asarray(out), np.asarray(ref),
                               rtol=5e-2, atol=5e-2)

    print("KERNEL_OK")
</pallas_src>

<mosaic_0001>
module attributes {stable_mosaic.version = 11 : i64} {
  func.func @gat_linear_kernel(%arg0: i32, %arg1: memref<128x16xbf16, #tpu.memory_space<vmem>>, %arg2: memref<16x128xf32, #tpu.memory_space<vmem>>, %arg3: memref<128x128xbf16, #tpu.memory_space<vmem>>) attributes {dimension_semantics = [#tpu.dimension_semantics<parallel>], iteration_bounds = array<i64: 2>, scalar_prefetch = 0 : i64, scratch_operands = 0 : i64, tpu.core_type = #tpu.core_type<tc>, window_params = [{transform_indices = @transform_0, window_bounds = array<i64: 128, 16>}, {pipeline_mode = #tpu.pipeline_mode<synchronous>, transform_indices = @transform_1, window_bounds = array<i64: 16, 128>}, {transform_indices = @transform_2, window_bounds = array<i64: 128, 128>}]} {
    %c0 = arith.constant 0 : index
    %c0_0 = arith.constant 0 : index
    %0 = vector.load %arg1[%c0, %c0_0] : memref<128x16xbf16, #tpu.memory_space<vmem>>, vector<128x16xbf16>
    %1 = arith.extf %0 : vector<128x16xbf16> to vector<128x16xf32>
    %c0_1 = arith.constant 0 : index
    %c0_2 = arith.constant 0 : index
    %2 = vector.load %arg2[%c0_1, %c0_2] : memref<16x128xf32, #tpu.memory_space<vmem>>, vector<16x128xf32>
    %cst = arith.constant dense<0.000000e+00> : vector<128x128xf32>
    %3 = tpu.matmul %1, %2, %cst {dimension_numbers = #tpu.dot_dimension_numbers<[1], [0], [0], [1], [0, 0, 1, 1], [], []>} : vector<128x16xf32>, vector<16x128xf32>, vector<128x128xf32> -> vector<128x128xf32>
    %4 = arith.truncf %3 : vector<128x128xf32> to vector<128x128xbf16>
    %c0_3 = arith.constant 0 : index
    %c0_4 = arith.constant 0 : index
    %5 = vector.load %arg3[%c0_3, %c0_4] : memref<128x128xbf16, #tpu.memory_space<vmem>>, vector<128x128xbf16>
    tpu.vector_store %arg3[%c0_3, %c0_4], %4 {strides = array<i32>} : memref<128x128xbf16, #tpu.memory_space<vmem>>, vector<128x128xbf16>,
    return
  }
  func.func @transform_0(%arg0: i32) -> (i32, i32) {
    %c0_i32 = arith.constant 0 : i32
    %c0_i32_0 = arith.constant 0 : i32
    return %arg0, %c0_i32 : i32, i32
  }
  func.func @transform_1(%arg0: i32) -> (i32, i32) {
    %c0_i32 = arith.constant 0 : i32
    %c0_i32_0 = arith.constant 0 : i32
    %c0_i32_1 = arith.constant 0 : i32
    return %c0_i32, %c0_i32_0 : i32, i32
  }
  func.func @transform_2(%arg0: i32) -> (i32, i32) {
    %c0_i32 = arith.constant 0 : i32
    %c0_i32_0 = arith.constant 0 : i32
    return %arg0, %c0_i32 : i32, i32
  }
}

</mosaic_0001>

<llo_original>
// kernel: tpu_custom_call.1
$region0: #{tpu_custom_call.1}
  #allocation0 [shape = 'u32[]', space=smem, size = 0x4, offset = 0x4, fixed_abs, tag = 'smem constant byte address 0x4 - core index']
  #allocation1 [shape = 'u32[144,128]{1,0:T(1,128)}', space=vmem, size = 0x12000, scoped, tag = 'internal scratch']
  %s0 = inlined_call_operand.vmem [shape: bf16[256,16], index: 0, kind: input, shape index: {}]
  %s1 = inlined_call_operand.vmem [shape: f32[16,128], index: 1, kind: input, shape index: {}]
  %s2 = inlined_call_operand.hbm [shape: bf16[256,128], index: 2, kind: output, shape index: {}]
  %s3 = sld [smem:[#allocation0]]
  $region41: #{tpu_custom_call.1} parent=0
    _
  %s5 = ssub.s32 1, %s3
  %s6 = scalar_select 0, %s5, %s3
  $region1: #{tpu_custom_call.1} parent=0
    #allocation2 [shape = 'u8[65536]{0}', space=vmem, size = 0x10000, scoped, tag = 'output window, operand 0']
    #allocation3 [shape = 's32[2]{0}', space=sflag, size = 0x8, scoped, tag = 'scoped memory for tpu_custom_call.1']
    %7 = vsyncpa [#allocation3], 0
    %s8 = scalar_lea.sflag [#allocation3], 1
    %9 = vsyncpa %s8, 0
    loop: start=0, step=1, limit=4
    $region2: #{tpu_custom_call.1} parent=1 // loop_pre_header
      _
    $region3: #{tpu_custom_call.1} parent=1 // loop_header
      %s11 = sphi 0, %s15
      %p12 = scmp.ge.s32.totalorder %s11, 4
      %s21 = sphi 0, %s23
      %s24 = sphi 0, %s21
      %s25 = sphi 0, %s24
      %s41 = sphi 0, %s25
      %s45 = sphi 0, %s45
      %s47 = sphi 0, %s45
      %s48 = sphi 0, %s47
      %s62 = sphi 0, %s48
      %s68 = sphi 0, %s70
      %s71 = sphi 0, %s68
      %s72 = sphi 0, %s71
      %s88 = sphi 0, %s72
    $region4: #{tpu_custom_call.1} parent=1 // loop_header_branch
      %14 = sbr.rel (%p12) target = $region8
    $region5: #{tpu_custom_call.1} parent=1 // loop_body
      %s16 = ssub.s32 %s11, 1
      %s17 = ssub.s32 %s11, 2
      %s18 = sadd.s32 %s11, 1
      %s19 = ssub.s32 %s11, %s18
      %p20 = scmp.eq.s32.totalorder %s19, 0
      %s22 = sadd.s32 %s21, 1
      %s23 = scalar_select %p20, %s21, %s22
      %p26 = pneg %p20
      %p27 = scmp.eq.s32.totalorder %s11, 1
      %p28 = por %p26, %p27
      %p29 = scmp.ne.s32.totalorder %s21, %s24
      %p30 = scmp.eq.s32.totalorder %s11, 0
      %p31 = por %p29, %p30
      %p32 = scmp.ne.s32.totalorder %s21, %s24
      %p33 = scmp.eq.s32.totalorder %s16, 1
      %p34 = por %p32, %p33
      %p35 = scmp.ne.s32.totalorder %s24, %s25
      %p36 = scmp.eq.s32.totalorder %s16, 0
      %p37 = por %p35, %p36
      %p38 = scmp.ne.s32.totalorder %s24, %s25
      %p39 = scmp.eq.s32.totalorder %s17, 1
      %p40 = por %p38, %p39
      %p42 = scmp.ne.s32.totalorder %s25, %s41
      %p43 = scmp.eq.s32.totalorder %s17, 0
      %p44 = por %p42, %p43
      %s46 = sadd.s32 %s45, 1
      %p49 = scmp.eq.s32.totalorder %s11, 1
      %p50 = scmp.ne.s32.totalorder %s45, %s47
      %p51 = scmp.eq.s32.totalorder %s11, 0
      %p52 = por %p50, %p51
      %p53 = scmp.ne.s32.totalorder %s45, %s47
      %p54 = scmp.eq.s32.totalorder %s16, 1
      %p55 = por %p53, %p54
      %p56 = scmp.ne.s32.totalorder %s47, %s48
      %p57 = scmp.eq.s32.totalorder %s16, 0
      %p58 = por %p56, %p57
      %p59 = scmp.ne.s32.totalorder %s47, %s48
      %p60 = scmp.eq.s32.totalorder %s17, 1
      %p61 = por %p59, %p60
      %p63 = scmp.ne.s32.totalorder %s48, %s62
      %p64 = scmp.eq.s32.totalorder %s17, 0
      %p65 = por %p63, %p64
      %s66 = ssub.s32 %s11, %s18
      %p67 = scmp.eq.s32.totalorder %s66, 0
      %s69 = sadd.s32 %s68, 1
      %s70 = scalar_select %p67, %s68, %s69
      %p73 = pneg %p67
      %p74 = scmp.eq.s32.totalorder %s11, 1
      %p75 = por %p73, %p74
      %p76 = scmp.ne.s32.totalorder %s68, %s71
      %p77 = scmp.eq.s32.totalorder %s11, 0
      %p78 = por %p76, %p77
      %p79 = scmp.ne.s32.totalorder %s68, %s71
      %p80 = scmp.eq.s32.totalorder %s16, 1
      %p81 = por %p79, %p80
      %p82 = scmp.ne.s32.totalorder %s71, %s72
      %p83 = scmp.eq.s32.totalorder %s16, 0
      %p84 = por %p82, %p83
      %p85 = scmp.ne.s32.totalorder %s71, %s72
      %p86 = scmp.eq.s32.totalorder %s17, 1
      %p87 = por %p85, %p86
      %p89 = scmp.ne.s32.totalorder %s72, %s88
      %p90 = scmp.eq.s32.totalorder %s17, 0
      %p91 = por %p89, %p90
      %p92 = scmp.le.s32.totalorder 1, %s11
      %p93 = scmp.lt.s32.totalorder %s11, 3
      %p94 = pnand %p92, %p93
      %p95 = pneg %p94
      // Predicated region
      $region9: #{tpu_custom_call.1} parent=5 // pred_check
        _
      $region10: #{tpu_custom_call.1} parent=5 // pred_check_branch
        %97 = sbr.rel (%p94) target = $region12
      $region11: #{tpu_custom_call.1} parent=5 // pred_region
        %s98 = ssub.s32 %s11, 1
        // Predicated region
        $region13: #{tpu_custom_call.1} parent=11 // pred_check
          %p99 = pneg %p58
        $region14: #{tpu_custom_call.1} parent=11 // pred_check_branch
          %101 = sbr.rel (%p99) target = $region16
        $region15: #{tpu_custom_call.1} parent=11 // pred_region
          _
        $region16: #{tpu_custom_call.1} parent=11 // pred_fallthru
          _
      $region12: #{tpu_custom_call.1} parent=5 // pred_fallthru
        _
      %p102 = scmp.lt.s32.totalorder %s11, 2
      // Predicated region
      $region17: #{tpu_custom_call.1} parent=5 // pred_check
        %p103 = pneg %p102
      $region18: #{tpu_custom_call.1} parent=5 // pred_check_branch
        %105 = sbr.rel (%p103) target = $region20
      $region19: #{tpu_custom_call.1} parent=5 // pred_region
        // Predicated region
        $region21: #{tpu_custom_call.1} parent=19 // pred_check
          %p106 = pneg %p31
        $region22: #{tpu_custom_call.1} parent=19 // pred_check_branch
          %108 = sbr.rel (%p106) target = $region24
        $region23: #{tpu_custom_call.1} parent=19 // pred_region
          %s109 = smul.u32 16, %s11
          %p110 = scmp.lt.s32.totalorder %s109, 31
          %s111 = scalar_select %p110, %s109, 31
          %s112 = smul.addr %s111, 4
          %s113 = scalar_lea.vmem %s0, %s112
          %s114 = smul.u32 16, %s11
        $region24: #{tpu_custom_call.1} parent=19 // pred_fallthru
          _
      $region20: #{tpu_custom_call.1} parent=5 // pred_fallthru
        _
      %p115 = scmp.le.s32.totalorder 1, %s11
      %p116 = scmp.lt.s32.totalorder %s11, 3
      %p117 = pnand %p115, %p116
      %p118 = pneg %p117
      // Predicated region
      $region25: #{tpu_custom_call.1} parent=5 // pred_check
        _
      $region26: #{tpu_custom_call.1} parent=5 // pred_check_branch
        %120 = sbr.rel (%p117) target = $region28
      $region27: #{tpu_custom_call.1} parent=5 // pred_region
        %s121 = ssub.s32 %s11, 1
        %s122 = smul.u32 16, %s16
        %p123 = scmp.lt.s32.totalorder %s122, 31
        %s124 = scalar_select %p123, %s122, 31
        %s125 = smul.addr %s124, 4
        %s126 = scalar_lea.vmem %s0, %s125
        %p127 = pneg %p37
        %p128 = pneg %p34
        %p129 = pneg %p58
        %p130 = pneg %p55
        %p131 = pneg %p84
        %p132 = pneg %p81
        %s133 = sand.u32 %s71, 1
        %s134 = scalar_lea.sflag [#allocation3], %s133
        %s135 = sand.u32 %s71, 1
        %s136 = smul.addr %s135, 64
        %s137 = scalar_lea.vmem [#allocation2], %s136
        %s138 = smul.u32 16, %s16
        %p139 = scmp.lt.s32.totalorder %s138, 31
        %s140 = scalar_select %p139, %s138, 31
        %s141 = smul.addr %s140, 4
        %s142 = scalar_lea.vmem %s0, %s141
        %s143 = smul.u32 16, %s16
        %s144 = smul.u32 16, %s16
        %v145 = vld [vmem:[%s142] sm:$0xf]
        %v146 = vld [vmem:[%s142 + $0x4] sm:$0xf]
        %v147 = vld [vmem:[%s142 + $0x8] sm:$0xf]
        %v148 = vld [vmem:[%s142 + $0xc] sm:$0xf]
        %v149 = vld [vmem:[%s142 + $0x10] sm:$0xf]
        %v150 = vld [vmem:[%s142 + $0x14] sm:$0xf]
        %v151 = vld [vmem:[%s142 + $0x18] sm:$0xf]
        %v152 = vld [vmem:[%s142 + $0x1c] sm:$0xf]
        %v153 = vld [vmem:[%s142 + $0x20] sm:$0xf]
        %v154 = vld [vmem:[%s142 + $0x24] sm:$0xf]
        %v155 = vld [vmem:[%s142 + $0x28] sm:$0xf]
        %v156 = vld [vmem:[%s142 + $0x2c] sm:$0xf]
        %v157 = vld [vmem:[%s142 + $0x30] sm:$0xf]
        %v158 = vld [vmem:[%s142 + $0x34] sm:$0xf]
        %v159 = vld [vmem:[%s142 + $0x38] sm:$0xf]
        %v160 = vld [vmem:[%s142 + $0x3c] sm:$0xf]
        %v161 = vunpack.c.l.bf16 %v145
        %v162 = vunpack.c.l.bf16 %v146
        %v163 = vunpack.c.l.bf16 %v147
        %v164 = vunpack.c.l.bf16 %v148
        %v165 = vunpack.c.l.bf16 %v149
        %v166 = vunpack.c.l.bf16 %v150
        %v167 = vunpack.c.l.bf16 %v151
        %v168 = vunpack.c.l.bf16 %v152
        %v169 = vunpack.c.l.bf16 %v153
        %v170 = vunpack.c.l.bf16 %v154
        %v171 = vunpack.c.l.bf16 %v155
        %v172 = vunpack.c.l.bf16 %v156
        %v173 = vunpack.c.l.bf16 %v157
        %v174 = vunpack.c.l.bf16 %v158
        %v175 = vunpack.c.l.bf16 %v159
        %v176 = vunpack.c.l.bf16 %v160
        %v177 = vld [vmem:[%s1] sm:$0xff]
        %v178 = vld [vmem:[%s1 + $0x8] sm:$0xff]
        %vm179 = vcmask 130048
        %v181 = vsel %vm179, %v161, 0
        %v184 = vsel %vm179, %v162, 0
        %v187 = vsel %vm179, %v163, 0
        %v190 = vsel %vm179, %v164, 0
        %v193 = vsel %vm179, %v165, 0
        %v196 = vsel %vm179, %v166, 0
        %v199 = vsel %vm179, %v167, 0
        %v202 = vsel %vm179, %v168, 0
        %v205 = vsel %vm179, %v169, 0
        %v208 = vsel %vm179, %v170, 0
        %v211 = vsel %vm179, %v171, 0
        %v214 = vsel %vm179, %v172, 0
        %v217 = vsel %vm179, %v173, 0
        %v220 = vsel %vm179, %v174, 0
        %v223 = vsel %vm179, %v175, 0
        %v226 = vsel %vm179, %v176, 0
        %228 = vmatprep.subr.mxu0 0.0
        %229 = vmatpush1.msra.mxu0 %v177
        %230 = vmatprep.subr.mxu0 0.0
        %231 = vmatpush1.msra.mxu0 %v178
        %232 = vmatprep.subr.mxu0 0.0
        %233 = vmatpush1.msra.mxu0 0.0
        %234 = vmatprep.subr.mxu0 0.0
        %235 = vmatpush1.msra.mxu0 0.0
        %236 = vmatprep.subr.mxu0 0.0
        %237 = vmatpush1.msra.mxu0 0.0
        %238 = vmatprep.subr.mxu0 0.0
        %239 = vmatpush1.msra.mxu0 0.0
        %240 = vmatprep.subr.mxu0 0.0
        %241 = vmatpush1.msra.mxu0 0.0
        %242 = vmatprep.subr.mxu0 0.0
        %243 = vmatpush1.msra.mxu0 0.0
        %244 = vmatprep.subr.mxu0 0.0
        %245 = vmatpush1.msra.mxu0 0.0
        %246 = vmatprep.subr.mxu0 0.0
        %247 = vmatpush1.msra.mxu0 0.0
        %248 = vmatprep.subr.mxu0 0.0
        %249 = vmatpush1.msra.mxu0 0.0
        %250 = vmatprep.subr.mxu0 0.0
        %251 = vmatpush1.msra.mxu0 0.0
        %252 = vmatprep.subr.mxu0 0.0
        %253 = vmatpush1.msra.mxu0 0.0
        %254 = vmatprep.subr.mxu0 0.0
        %255 = vmatpush1.msra.mxu0 0.0
        %256 = vmatprep.subr.mxu0 0.0
        %257 = vmatpush1.msra.mxu0 0.0
        %258 = vmatprep.subr.mxu0 0.0
        %259 = vmatpush1.msra.mxu0 0.0
        %260 = vmatprep.subr.mxu0 0.0
        %261 = vmatpush1.msra.mxu0 0.0
        %262 = vmatprep.subr.mxu0 0.0
        %263 = vmatpush1.msra.mxu0 0.0
        %264 = vmatprep.subr.mxu0 0.0
        %265 = vmatpush1.msra.mxu0 0.0
        %266 = vmatprep.subr.mxu0 0.0
        %267 = vmatpush1.msra.mxu0 0.0
        %268 = vmatprep.subr.mxu0 0.0
        %269 = vmatpush1.msra.mxu0 0.0
        %270 = vmatprep.subr.mxu0 0.0
        %271 = vmatpush1.msra.mxu0 0.0
        %272 = vmatprep.subr.mxu0 0.0
        %273 = vmatpush1.msra.mxu0 0.0
        %274 = vmatprep.subr.mxu0 0.0
        %275 = vmatpush1.msra.mxu0 0.0
        %276 = vmatprep.subr.mxu0 0.0
        %277 = vmatpush1.msra.mxu0 0.0
        %278 = vmatprep.subr.mxu0 0.0
        %279 = vmatpush1.msra.mxu0 0.0
        %280 = vmatprep.subr.mxu0 0.0
        %281 = vmatpush1.msra.mxu0 0.0
        %282 = vmatprep.subr.mxu0 0.0
        %283 = vmatpush1.msra.mxu0 0.0
        %284 = vmatprep.subr.mxu0 0.0
        %285 = vmatpush1.msra.mxu0 0.0
        %286 = vmatprep.subr.mxu0 0.0
        %287 = vmatpush1.msra.mxu0 0.0
        %288 = vmatprep.subr.mxu0 0.0
        %289 = vmatpush1.msra.mxu0 0.0
        %290 = vmatprep.subr.mxu0 0.0
        %291 = vmatpush1.msra.mxu0 0.0
        %292 = vmatprep.mubr.f32.mxu0 0.0
        %293 = vmatmul.mubr.f32.gmra.mrb[0].mxu0 %v181
        %v294 = vpop.f32.mrb[0].mxu0
        %v295 = vadd.f32 0.0, %v294
        %v296 = vpop.f32.mrb[0].mxu0
        %297 = vmatprep.mubr.f32.mxu0 0.0
        %298 = vmatmul.mubr.f32.gmra.mrb[0].mxu0 %v184
        %v299 = vpop.f32.mrb[0].mxu0
        %v300 = vadd.f32 0.0, %v299
        %v301 = vpop.f32.mrb[0].mxu0
        %302 = vmatprep.mubr.f32.mxu0 0.0
        %303 = vmatmul.mubr.f32.gmra.mrb[0].mxu0 %v187
        %v304 = vpop.f32.mrb[0].mxu0
        %v305 = vadd.f32 0.0, %v304
        %v306 = vpop.f32.mrb[0].mxu0
        %307 = vmatprep.mubr.f32.mxu0 0.0
        %308 = vmatmul.mubr.f32.gmra.mrb[0].mxu0 %v190
        %v309 = vpop.f32.mrb[0].mxu0
        %v310 = vadd.f32 0.0, %v309
        %v311 = vpop.f32.mrb[0].mxu0
        %312 = vmatprep.mubr.f32.mxu0 0.0
        %313 = vmatmul.mubr.f32.gmra.mrb[0].mxu0 %v193
        %v314 = vpop.f32.mrb[0].mxu0
        %v315 = vadd.f32 0.0, %v314
        %v316 = vpop.f32.mrb[0].mxu0
        %317 = vmatprep.mubr.f32.mxu0 0.0
        %318 = vmatmul.mubr.f32.gmra.mrb[0].mxu0 %v196
        %v319 = vpop.f32.mrb[0].mxu0
        %v320 = vadd.f32 0.0, %v319
        %v321 = vpop.f32.mrb[0].mxu0
        %322 = vmatprep.mubr.f32.mxu0 0.0
        %323 = vmatmul.mubr.f32.gmra.mrb[0].mxu0 %v199
        %v324 = vpop.f32.mrb[0].mxu0
        %v325 = vadd.f32 0.0, %v324
        %v326 = vpop.f32.mrb[0].mxu0
        %327 = vmatprep.mubr.f32.mxu0 0.0
        %328 = vmatmul.mubr.f32.gmra.mrb[0].mxu0 %v202
        %v329 = vpop.f32.mrb[0].mxu0
        %v330 = vadd.f32 0.0, %v329
        %v331 = vpop.f32.mrb[0].mxu0
        %332 = vmatprep.mubr.f32.mxu0 0.0
        %333 = vmatmul.mubr.f32.gmra.mrb[0].mxu0 %v205
        %v334 = vpop.f32.mrb[0].mxu0
        %v335 = vadd.f32 0.0, %v334
        %v336 = vpop.f32.mrb[0].mxu0
        %337 = vmatprep.mubr.f32.mxu0 0.0
        %338 = vmatmul.mubr.f32.gmra.mrb[0].mxu0 %v208
        %v339 = vpop.f32.mrb[0].mxu0
        %v340 = vadd.f32 0.0, %v339
        %v341 = vpop.f32.mrb[0].mxu0
        %342 = vmatprep.mubr.f32.mxu0 0.0
        %343 = vmatmul.mubr.f32.gmra.mrb[0].mxu0 %v211
        %v344 = vpop.f32.mrb[0].mxu0
        %v345 = vadd.f32 0.0, %v344
        %v346 = vpop.f32.mrb[0].mxu0
        %347 = vmatprep.mubr.f32.mxu0 0.0
        %348 = vmatmul.mubr.f32.gmra.mrb[0].mxu0 %v214
        %v349 = vpop.f32.mrb[0].mxu0
        %v350 = vadd.f32 0.0, %v349
        %v351 = vpop.f32.mrb[0].mxu0
        %352 = vmatprep.mubr.f32.mxu0 0.0
        %353 = vmatmul.mubr.f32.gmra.mrb[0].mxu0 %v217
        %v354 = vpop.f32.mrb[0].mxu0
        %v355 = vadd.f32 0.0, %v354
        %v356 = vpop.f32.mrb[0].mxu0
        %357 = vmatprep.mubr.f32.mxu0 0.0
        %358 = vmatmul.mubr.f32.gmra.mrb[0].mxu0 %v220
        %v359 = vpop.f32.mrb[0].mxu0
        %v360 = vadd.f32 0.0, %v359
        %v361 = vpop.f32.mrb[0].mxu0
        %362 = vmatprep.mubr.f32.mxu0 0.0
        %363 = vmatmul.mubr.f32.gmra.mrb[0].mxu0 %v223
        %v364 = vpop.f32.mrb[0].mxu0
        %v365 = vadd.f32 0.0, %v364
        %v366 = vpop.f32.mrb[0].mxu0
        %367 = vmatprep.mubr.f32.mxu0 0.0
        %368 = vmatmul.mubr.f32.gmra.mrb[0].mxu0 %v226
        %v369 = vpop.f32.mrb[0].mxu0
        %v370 = vadd.f32 0.0, %v369
        %v371 = vpop.f32.mrb[0].mxu0
        %372 = vdwg.mxu0
        %v373 = vpack.c.bf16 %v300, %v295
        %v374 = vpack.c.bf16 %v310, %v305
        %v375 = vpack.c.bf16 %v320, %v315
        %v376 = vpack.c.bf16 %v330, %v325
        %v377 = vpack.c.bf16 %v340, %v335
        %v378 = vpack.c.bf16 %v350, %v345
        %v379 = vpack.c.bf16 %v360, %v355
        %v380 = vpack.c.bf16 %v370, %v365
        %v389 = vunpack.c.l.b16 %v373
        %v390 = vunpack.c.h.b16 %v373
        %v391 = vunpack.c.l.b16 %v374
        %v392 = vunpack.c.h.b16 %v374
        %v393 = vunpack.c.l.b16 %v375
        %v394 = vunpack.c.h.b16 %v375
        %v395 = vunpack.c.l.b16 %v376
        %v396 = vunpack.c.h.b16 %v376
        %v397 = vunpack.c.l.b16 %v377
        %v398 = vunpack.c.h.b16 %v377
        %v399 = vunpack.c.l.b16 %v378
        %v400 = vunpack.c.h.b16 %v378
        %v401 = vunpack.c.l.b16 %v379
        %v402 = vunpack.c.h.b16 %v379
        %v403 = vunpack.c.l.b16 %v380
        %v404 = vunpack.c.h.b16 %v380
        %v405 = vpack.c.b16 %v389, %v389
        %v406 = vpack.c.b16 %v390, %v390
        %v407 = vpack.c.b16 %v391, %v391
        %v408 = vpack.c.b16 %v392, %v392
        %v409 = vpack.c.b16 %v393, %v393
        %v410 = vpack.c.b16 %v394, %v394
        %v411 = vpack.c.b16 %v395, %v395
        %v412 = vpack.c.b16 %v396, %v396
        %v413 = vpack.c.b16 %v397, %v397
        %v414 = vpack.c.b16 %v398, %v398
        %v415 = vpack.c.b16 %v399, %v399
        %v416 = vpack.c.b16 %v400, %v400
        %v417 = vpack.c.b16 %v401, %v401
        %v418 = vpack.c.b16 %v402, %v402
        %v419 = vpack.c.b16 %v403, %v403
        %v420 = vpack.c.b16 %v404, %v404
        %437 = vst [vmem:[%s137] sm:$0xf] %v405
        %438 = vst [vmem:[%s137 + $0x4] sm:$0xf] %v406
        %439 = vst [vmem:[%s137 + $0x8] sm:$0xf] %v407
        %440 = vst [vmem:[%s137 + $0xc] sm:$0xf] %v408
        %441 = vst [vmem:[%s137 + $0x10] sm:$0xf] %v409
        %442 = vst [vmem:[%s137 + $0x14] sm:$0xf] %v410
        %443 = vst [vmem:[%s137 + $0x18] sm:$0xf] %v411
        %444 = vst [vmem:[%s137 + $0x1c] sm:$0xf] %v412
        %445 = vst [vmem:[%s137 + $0x20] sm:$0xf] %v413
        %446 = vst [vmem:[%s137 + $0x24] sm:$0xf] %v414
        %447 = vst [vmem:[%s137 + $0x28] sm:$0xf] %v415
        %448 = vst [vmem:[%s137 + $0x2c] sm:$0xf] %v416
        %449 = vst [vmem:[%s137 + $0x30] sm:$0xf] %v417
        %450 = vst [vmem:[%s137 + $0x34] sm:$0xf] %v418
        %451 = vst [vmem:[%s137 + $0x38] sm:$0xf] %v419
        %452 = vst [vmem:[%s137 + $0x3c] sm:$0xf] %v420
        %s453 = sand.u32 %s71, 1
        %s454 = scalar_lea.sflag [#allocation3], %s453
        %s455 = sand.u32 %s71, 1
        %s456 = smul.addr %s455, 64
        %s457 = scalar_lea.vmem [#allocation2], %s456
        // Predicated region
        $region29: #{tpu_custom_call.1} parent=27 // pred_check
          %p458 = pneg %p81
        $region30: #{tpu_custom_call.1} parent=27 // pred_check_branch
          %460 = sbr.rel (%p458) target = $region32
        $region31: #{tpu_custom_call.1} parent=27 // pred_region
          %s461 = smul.u32 16, %s16
          %s463 = ssub.s32 1024, 1024
          %464 = vsyncadd %s454, %s463
          %s465 = smul.addr %s461, 64
          %s466 = scalar_lea.hbm %s2, %s465
          %s467 = sshll.u32 %s457, 4
          %s468 = int_to_ptr.vmem [resolvable:$true] %s467
          %473 = dma.vmem_to_hbm [thread:$0]  %s468, 1024, %s466, %s454, 64, 64, 4
        $region32: #{tpu_custom_call.1} parent=27 // pred_fallthru
          _
      $region28: #{tpu_custom_call.1} parent=5 // pred_fallthru
        _
      %p474 = scmp.le.s32.totalorder 2, %s11
      // Predicated region
      $region33: #{tpu_custom_call.1} parent=5 // pred_check
        %p475 = pneg %p474
      $region34: #{tpu_custom_call.1} parent=5 // pred_check_branch
        %477 = sbr.rel (%p475) target = $region36
      $region35: #{tpu_custom_call.1} parent=5 // pred_region
        %s478 = ssub.s32 %s11, 2
        // Predicated region
        $region37: #{tpu_custom_call.1} parent=35 // pred_check
          %p479 = pneg %p87
        $region38: #{tpu_custom_call.1} parent=35 // pred_check_branch
          %481 = sbr.rel (%p479) target = $region40
        $region39: #{tpu_custom_call.1} parent=35 // pred_region
          %s482 = sand.u32 %s72, 1
          %s483 = scalar_lea.sflag [#allocation3], %s482
          %s484 = sand.u32 %s72, 1
          %s485 = smul.addr %s484, 64
          %s486 = scalar_lea.vmem [#allocation2], %s485
          %487 = dma.done %s483, 1024
        $region40: #{tpu_custom_call.1} parent=35 // pred_fallthru
          _
      $region36: #{tpu_custom_call.1} parent=5 // pred_fallthru
        _
    $region6: #{tpu_custom_call.1} parent=1 // loop_footer
      %s15 = sadd.s32 1, %s11
    $region7: #{tpu_custom_call.1} parent=1 // loop_footer_branch
      %10 = sbr.rel target = $region3
    $region8: #{tpu_custom_call.1} parent=1 // loop_exit
      _
    %488 = vsyncpa [#allocation3], 1
    %s489 = scalar_lea.sflag [#allocation3], 1
    %490 = vsyncpa %s489, 1

</llo_original>
